<compile_context>
chip_gen: v7x
topology: tpu7x:2x2x1
jax: 0.10.0
libtpu: 0.0.40
codegen_flags: <defaults>
</compile_context>

<pallas_src>
import functools

import jax
import jax.numpy as jnp
from jax import lax
from jax.experimental import pallas as pl
from jax.experimental.pallas import tpu as pltpu


def _relu(v):
    return jnp.maximum(v, 0.0)


def sn3h_kernel(x_ref, w1_ref, b1_ref, w2_ref, b2_ref, w3_ref, b3_ref,
                o_ref, h_ref, *, bound, afunc):
    # Shared hidden activations are computed once (first dim_out tile only)
    # into VMEM scratch; subsequent j-tiles (if any) just reuse them.
    @pl.when(pl.program_id(0) == 0)
    def _():
        # fc1: x (B, dim_in) contracted with lane-dense W1 (M, dim_in) on the
        # last axes -> (B, M).  Keeping W1 as (M, dim_in) avoids the 16x lane
        # padding / strided DMA of a (dim_in, M) tile; MXU cost is unchanged.
        h = lax.dot_general(
            x_ref[...], w1_ref[...],
            dimension_numbers=(((1,), (1,)), ((), ())),
            preferred_element_type=jnp.float32)
        h = afunc(h + b1_ref[...])
        # fc2: (B, M) @ (M, M) -> (B, M)
        h = jnp.dot(h, w2_ref[...], preferred_element_type=jnp.float32)
        h_ref[...] = afunc(h + b2_ref[...])

    # fc3 tile: (B, M) @ (M, tile_o) -> (B, tile_o), then hardtanh clamp.
    y = jnp.dot(h_ref[...], w3_ref[...],
                preferred_element_type=jnp.float32) + b3_ref[...]
    o_ref[...] = jnp.clip(y, -bound, bound)


def prepare_sn3h_params(fc1_w, fc1_b, fc2_w, fc2_b, fc3_w, fc3_b,
                        dtype=jnp.float32):
    """One-time parameter re-layout (call at init, NOT per forward call)."""
    return (
        jnp.asarray(fc1_w, dtype),                 # (M, dim_in)  lane-dense (NOT transposed)
        jnp.asarray(fc1_b, dtype).reshape(1, -1),  # (1, M)
        jnp.asarray(fc2_w, dtype).T,               # (M, M)
        jnp.asarray(fc2_b, dtype).reshape(1, -1),  # (1, M)
        jnp.asarray(fc3_w, dtype).T,               # (M, dim_out) lane-dense
        jnp.asarray(fc3_b, dtype).reshape(1, -1),  # (1, dim_out)
    )


def sn3h_forward(x, params, bound, *, afunc=_relu, tile_o=None):
    """x: (B, *shape_in); params from prepare_sn3h_params. Returns (B, dim_out)."""
    w1, b1r, w2t, b2r, w3t, b3r = params
    B = x.shape[0]
    x2 = x.reshape(B, -1).astype(jnp.float32)
    M, dim_in = w1.shape
    dim_out = w3t.shape[1]
    assert x2.shape[1] == dim_in

    # Pad batch to a multiple of 8 (f32 sublane count); slice result back.
    B_pad = max(8, ((B + 7) // 8) * 8)
    if B_pad != B:
        x2 = jnp.pad(x2, ((0, B_pad - B), (0, 0)))

    # Default: a single grid step covering all of dim_out (this kernel is
    # overhead/DMA bound, not MXU bound -- don't split the output).
    if tile_o is None or tile_o >= dim_out:
        tile_o = dim_out
    assert dim_out % tile_o == 0
    grid = (dim_out // tile_o,)

    kernel = functools.partial(sn3h_kernel, bound=float(bound), afunc=afunc)

    itemsize = jnp.dtype(jnp.float32).itemsize
    flops = 2 * B_pad * (dim_in * M + M * M + M * dim_out)
    bytes_accessed = itemsize * (
        B_pad * dim_in                 # x
        + M * dim_in + M               # fc1
        + M * M + M                    # fc2
        + M * dim_out + dim_out        # fc3
        + B_pad * dim_out)             # output

    out = pl.pallas_call(
        kernel,
        out_shape=jax.ShapeDtypeStruct((B_pad, dim_out), jnp.float32),
        grid_spec=pltpu.PrefetchScalarGridSpec(
            num_scalar_prefetch=0,
            grid=grid,
            in_specs=[
                pl.BlockSpec((B_pad, dim_in), lambda j: (0, 0)),  # x    (resident)
                pl.BlockSpec((M, dim_in), lambda j: (0, 0)),      # W1   (lane-dense, resident)
                pl.BlockSpec((1, M), lambda j: (0, 0)),           # b1   (resident)
                pl.BlockSpec((M, M), lambda j: (0, 0)),           # W2^T (resident)
                pl.BlockSpec((1, M), lambda j: (0, 0)),           # b2   (resident)
                pl.BlockSpec((M, tile_o), lambda j: (0, j)),      # W3^T tile
                pl.BlockSpec((1, tile_o), lambda j: (0, j)),      # b3   tile
            ],
            out_specs=pl.BlockSpec((B_pad, tile_o), lambda j: (0, j)),
            scratch_shapes=[pltpu.VMEM((B_pad, M), jnp.float32)],  # shared h
        ),
        compiler_params=pltpu.CompilerParams(
            dimension_semantics=("arbitrary",)),
        cost_estimate=pl.CostEstimate(
            flops=flops, transcendentals=0, bytes_accessed=bytes_accessed),
    )(x2, w1, b1r, w2t, b2r, w3t, b3r)

    return out[:B] if B_pad != B else out


def sn3h_reference(x, fc1_w, fc1_b, fc2_w, fc2_b, fc3_w, fc3_b, bound):
    """Pure-JAX reference mirroring the PyTorch module exactly (afunc = relu)."""
    B = x.shape[0]
    xf = x.reshape(B, -1).astype(jnp.float32)
    h = jnp.maximum(xf @ fc1_w.T + fc1_b, 0.0)
    h = jnp.maximum(h @ fc2_w.T + fc2_b, 0.0)
    y = h @ fc3_w.T + fc3_b
    return jnp.clip(y, -bound, bound)


if __name__ == "__main__":
    # Small configuration consistent with the PyTorch __init__.
    B = 4
    shape_in = (4, 16, 16)   # dim_in = 1024
    dim_in = 4 * 16 * 16
    module_size = 8          # M (must be >= 2)
    dim_out = 256
    bound = 2.5
    # afunc = relu ; zero=False (the `zero` flag only zeroes fc3 at init time)

    key = jax.random.PRNGKey(0)
    kx, k1, kb1, k2, kb2, k3, kb3 = jax.random.split(key, 7)

    # PyTorch nn.Linear default init: uniform(-1/sqrt(fan_in), 1/sqrt(fan_in)).
    s1 = 1.0 / dim_in ** 0.5
    s2 = 1.0 / module_size ** 0.5
    fc1_w = jax.random.uniform(k1, (module_size, dim_in), jnp.float32, -s1, s1)
    fc1_b = jax.random.uniform(kb1, (module_size,), jnp.float32, -s1, s1)
    fc2_w = jax.random.uniform(k2, (module_size, module_size), jnp.float32, -s2, s2)
    fc2_b = jax.random.uniform(kb2, (module_size,), jnp.float32, -s2, s2)
    fc3_w = jax.random.uniform(k3, (dim_out, module_size), jnp.float32, -s2, s2)
    fc3_b = jax.random.uniform(kb3, (dim_out,), jnp.float32, -s2, s2)

    x = jax.random.normal(kx, (B,) + shape_in, jnp.float32)

    # One-time layout prep (hoisted out of the per-call path).
    params = prepare_sn3h_params(fc1_w, fc1_b, fc2_w, fc2_b, fc3_w, fc3_b)

    out = sn3h_forward(x, params, bound)
    out = jax.block_until_ready(out)

    ref = sn3h_reference(x, fc1_w, fc1_b, fc2_w, fc2_b, fc3_w, fc3_b, bound)
    assert out.shape == (B, dim_out), out.shape
    assert jnp.allclose(out, ref, atol=1e-5, rtol=1e-5), \
        float(jnp.max(jnp.abs(out - ref)))

    print("KERNEL_OK")
</pallas_src>

<mosaic_0001>
module attributes {stable_mosaic.version = 11 : i64} {
  func.func @sn3h_kernel(%arg0: i32, %arg1: memref<8x1024xf32, #tpu.memory_space<vmem>>, %arg2: memref<8x1024xf32, #tpu.memory_space<vmem>>, %arg3: memref<1x8xf32, #tpu.memory_space<vmem>>, %arg4: memref<8x8xf32, #tpu.memory_space<vmem>>, %arg5: memref<1x8xf32, #tpu.memory_space<vmem>>, %arg6: memref<8x256xf32, #tpu.memory_space<vmem>>, %arg7: memref<1x256xf32, #tpu.memory_space<vmem>>, %arg8: memref<8x256xf32, #tpu.memory_space<vmem>>, %arg9: memref<8x8xf32, #tpu.memory_space<vmem>>) attributes {dimension_semantics = [#tpu.dimension_semantics<arbitrary>], iteration_bounds = array<i64: 1>, scalar_prefetch = 0 : i64, scratch_operands = 1 : i64, tpu.core_type = #tpu.core_type<tc>, window_params = [{pipeline_mode = #tpu.pipeline_mode<synchronous>, transform_indices = @transform_0, window_bounds = array<i64: 8, 1024>}, {pipeline_mode = #tpu.pipeline_mode<synchronous>, transform_indices = @transform_1, window_bounds = array<i64: 8, 1024>}, {pipeline_mode = #tpu.pipeline_mode<synchronous>, transform_indices = @transform_2, window_bounds = array<i64: 1, 8>}, {pipeline_mode = #tpu.pipeline_mode<synchronous>, transform_indices = @transform_3, window_bounds = array<i64: 8, 8>}, {pipeline_mode = #tpu.pipeline_mode<synchronous>, transform_indices = @transform_4, window_bounds = array<i64: 1, 8>}, {transform_indices = @transform_5, window_bounds = array<i64: 8, 256>}, {transform_indices = @transform_6, window_bounds = array<i64: 1, 256>}, {transform_indices = @transform_7, window_bounds = array<i64: 8, 256>}]} {
    %c0_i32 = arith.constant 0 : i32
    %0 = arith.cmpi eq, %arg0, %c0_i32 : i32
    %1 = arith.extui %0 : i1 to i32
    %c0_i32_0 = arith.constant 0 : i32
    %2 = arith.cmpi ne, %1, %c0_i32_0 : i32
    scf.if %2 {
      %c0_10 = arith.constant 0 : index
      %c0_11 = arith.constant 0 : index
      %14 = vector.load %arg1[%c0_10, %c0_11] : memref<8x1024xf32, #tpu.memory_space<vmem>>, vector<8x1024xf32>
      %c0_12 = arith.constant 0 : index
      %c0_13 = arith.constant 0 : index
      %15 = vector.load %arg2[%c0_12, %c0_13] : memref<8x1024xf32, #tpu.memory_space<vmem>>, vector<8x1024xf32>
      %cst_14 = arith.constant dense<0.000000e+00> : vector<8x8xf32>
      %16 = tpu.matmul %14, %15, %cst_14 {dimension_numbers = #tpu.dot_dimension_numbers<[1], [1], [0], [0], [0, 0, 1, 0], [], []>} : vector<8x1024xf32>, vector<8x1024xf32>, vector<8x8xf32> -> vector<8x8xf32>
      %c0_15 = arith.constant 0 : index
      %c0_16 = arith.constant 0 : index
      %17 = vector.load %arg3[%c0_15, %c0_16] : memref<1x8xf32, #tpu.memory_space<vmem>>, vector<1x8xf32>
      %18 = vector.broadcast %17 : vector<1x8xf32> to vector<8x8xf32>
      %19 = arith.addf %16, %18 : vector<8x8xf32>
      %cst_17 = arith.constant 0.000000e+00 : f32
      %20 = vector.broadcast %cst_17 : f32 to vector<8x8xf32>
      %21 = arith.maximumf %19, %20 : vector<8x8xf32>
      %c0_18 = arith.constant 0 : index
      %c0_19 = arith.constant 0 : index
      %22 = vector.load %arg4[%c0_18, %c0_19] : memref<8x8xf32, #tpu.memory_space<vmem>>, vector<8x8xf32>
      %cst_20 = arith.constant dense<0.000000e+00> : vector<8x8xf32>
      %23 = tpu.matmul %21, %22, %cst_20 {dimension_numbers = #tpu.dot_dimension_numbers<[1], [0], [0], [1], [0, 0, 1, 1], [], []>} : vector<8x8xf32>, vector<8x8xf32>, vector<8x8xf32> -> vector<8x8xf32>
      %c0_21 = arith.constant 0 : index
      %c0_22 = arith.constant 0 : index
      %24 = vector.load %arg5[%c0_21, %c0_22] : memref<1x8xf32, #tpu.memory_space<vmem>>, vector<1x8xf32>
      %25 = vector.broadcast %24 : vector<1x8xf32> to vector<8x8xf32>
      %26 = arith.addf %23, %25 : vector<8x8xf32>
      %cst_23 = arith.constant 0.000000e+00 : f32
      %27 = vector.broadcast %cst_23 : f32 to vector<8x8xf32>
      %28 = arith.maximumf %26, %27 : vector<8x8xf32>
      %c0_24 = arith.constant 0 : index
      %c0_25 = arith.constant 0 : index
      %29 = vector.load %arg9[%c0_24, %c0_25] : memref<8x8xf32, #tpu.memory_space<vmem>>, vector<8x8xf32>
      tpu.vector_store %arg9[%c0_24, %c0_25], %28 {strides = array<i32>} : memref<8x8xf32, #tpu.memory_space<vmem>>, vector<8x8xf32>,
    } else {
    }
    %c0 = arith.constant 0 : index
    %c0_1 = arith.constant 0 : index
    %3 = vector.load %arg9[%c0, %c0_1] : memref<8x8xf32, #tpu.memory_space<vmem>>, vector<8x8xf32>
    %c0_2 = arith.constant 0 : index
    %c0_3 = arith.constant 0 : index
    %4 = vector.load %arg6[%c0_2, %c0_3] : memref<8x256xf32, #tpu.memory_space<vmem>>, vector<8x256xf32>
    %cst = arith.constant dense<0.000000e+00> : vector<8x256xf32>
    %5 = tpu.matmul %3, %4, %cst {dimension_numbers = #tpu.dot_dimension_numbers<[1], [0], [0], [1], [0, 0, 1, 1], [], []>} : vector<8x8xf32>, vector<8x256xf32>, vector<8x256xf32> -> vector<8x256xf32>
    %c0_4 = arith.constant 0 : index
    %c0_5 = arith.constant 0 : index
    %6 = vector.load %arg7[%c0_4, %c0_5] : memref<1x256xf32, #tpu.memory_space<vmem>>, vector<1x256xf32>
    %7 = vector.broadcast %6 : vector<1x256xf32> to vector<8x256xf32>
    %8 = arith.addf %5, %7 : vector<8x256xf32>
    %cst_6 = arith.constant -2.500000e+00 : f32
    %cst_7 = arith.constant 2.500000e+00 : f32
    %9 = vector.broadcast %cst_6 : f32 to vector<8x256xf32>
    %10 = arith.maximumf %9, %8 : vector<8x256xf32>
    %11 = vector.broadcast %cst_7 : f32 to vector<8x256xf32>
    %12 = arith.minimumf %11, %10 : vector<8x256xf32>
    %c0_8 = arith.constant 0 : index
    %c0_9 = arith.constant 0 : index
    %13 = vector.load %arg8[%c0_8, %c0_9] : memref<8x256xf32, #tpu.memory_space<vmem>>, vector<8x256xf32>
    tpu.vector_store %arg8[%c0_8, %c0_9], %12 {strides = array<i32>} : memref<8x256xf32, #tpu.memory_space<vmem>>, vector<8x256xf32>,
    return
  }
  func.func @transform_0(%arg0: i32) -> (i32, i32) {
    %c0_i32 = arith.constant 0 : i32
    %c0_i32_0 = arith.constant 0 : i32
    %c0_i32_1 = arith.constant 0 : i32
    return %c0_i32, %c0_i32_0 : i32, i32
  }
  func.func @transform_1(%arg0: i32) -> (i32, i32) {
    %c0_i32 = arith.constant 0 : i32
    %c0_i32_0 = arith.constant 0 : i32
    %c0_i32_1 = arith.constant 0 : i32
    return %c0_i32, %c0_i32_0 : i32, i32
  }
  func.func @transform_2(%arg0: i32) -> (i32, i32) {
    %c0_i32 = arith.constant 0 : i32
    %c0_i32_0 = arith.constant 0 : i32
    %c0_i32_1 = arith.constant 0 : i32
    return %c0_i32, %c0_i32_0 : i32, i32
  }
  func.func @transform_3(%arg0: i32) -> (i32, i32) {
    %c0_i32 = arith.constant 0 : i32
    %c0_i32_0 = arith.constant 0 : i32
    %c0_i32_1 = arith.constant 0 : i32
    return %c0_i32, %c0_i32_0 : i32, i32
  }
  func.func @transform_4(%arg0: i32) -> (i32, i32) {
    %c0_i32 = arith.constant 0 : i32
    %c0_i32_0 = arith.constant 0 : i32
    %c0_i32_1 = arith.constant 0 : i32
    return %c0_i32, %c0_i32_0 : i32, i32
  }
  func.func @transform_5(%arg0: i32) -> (i32, i32) {
    %c0_i32 = arith.constant 0 : i32
    %c0_i32_0 = arith.constant 0 : i32
    return %c0_i32, %arg0 : i32, i32
  }
  func.func @transform_6(%arg0: i32) -> (i32, i32) {
    %c0_i32 = arith.constant 0 : i32
    %c0_i32_0 = arith.constant 0 : i32
    return %c0_i32, %arg0 : i32, i32
  }
  func.func @transform_7(%arg0: i32) -> (i32, i32) {
    %c0_i32 = arith.constant 0 : i32
    %c0_i32_0 = arith.constant 0 : i32
    return %c0_i32, %arg0 : i32, i32
  }
}

</mosaic_0001>

<llo_original>
// kernel: tpu_custom_call.1
$region0: #{tpu_custom_call.1}
  #allocation0 [shape = 'u32[]', space=smem, size = 0x4, offset = 0x4, fixed_abs, tag = 'smem constant byte address 0x4 - core index']
  #allocation1 [shape = 'u32[144,128]{1,0:T(1,128)}', space=vmem, size = 0x12000, scoped, tag = 'internal scratch']
  #allocation2 [shape = 'f32[8,8]{1,0:T(8,128)}', space=vmem, size = 0x1000, scoped, tag = 'scratch operand']
  %s0 = inlined_call_operand.hbm [shape: f32[8,1024], index: 0, kind: input, shape index: {}]
  %s1 = inlined_call_operand.hbm [shape: f32[8,1024], index: 1, kind: input, shape index: {}]
  %s2 = inlined_call_operand.hbm [shape: f32[1,8], index: 2, kind: input, shape index: {}]
  %s3 = inlined_call_operand.hbm [shape: f32[8,8], index: 3, kind: input, shape index: {}]
  %s4 = inlined_call_operand.hbm [shape: f32[1,8], index: 4, kind: input, shape index: {}]
  %s5 = inlined_call_operand.vmem [shape: f32[8,256], index: 5, kind: input, shape index: {}]
  %s6 = inlined_call_operand.vmem [shape: f32[1,256], index: 6, kind: input, shape index: {}]
  %s7 = inlined_call_operand.hbm [shape: f32[8,256], index: 7, kind: output, shape index: {}]
  %s8 = sld [smem:[#allocation0]]
  $region62: #{tpu_custom_call.1} parent=0
    _
  %s10 = ssub.s32 1, %s8
  %s11 = scalar_select 0, %s10, %s8
  $region1: #{tpu_custom_call.1} parent=0
    #allocation3 [shape = 'u8[32768]{0}', space=vmem, size = 0x8000, scoped, tag = 'input window, operand 0, single buffered']
    #allocation4 [shape = 's32[1]{0}', space=sflag, size = 0x4, scoped, tag = 'scoped memory for tpu_custom_call.1']
    #allocation5 [shape = 's32[1]{0}', space=sflag, size = 0x4, scoped, tag = 'scoped memory for tpu_custom_call.1']
    #allocation6 [shape = 'u8[32768]{0}', space=vmem, size = 0x8000, scoped, tag = 'input window, operand 1, single buffered']
    #allocation7 [shape = 's32[1]{0}', space=sflag, size = 0x4, scoped, tag = 'scoped memory for tpu_custom_call.1']
    #allocation8 [shape = 'u8[512]{0}', space=vmem, size = 0x400, scoped, tag = 'input window, operand 2, single buffered']
    #allocation9 [shape = 'u8[4096]{0}', space=vmem, size = 0x1000, scoped, tag = 'input window, operand 3, single buffered']
    #allocation10 [shape = 's32[1]{0}', space=sflag, size = 0x4, scoped, tag = 'scoped memory for tpu_custom_call.1']
    #allocation11 [shape = 'u8[512]{0}', space=vmem, size = 0x400, scoped, tag = 'input window, operand 4, single buffered']
    #allocation12 [shape = 'u8[8192]{0}', space=vmem, size = 0x2000, scoped, tag = 'output window, operand 0, single buffered']
    %12 = vsyncpa [#allocation4], 0
    %13 = vsyncpa [#allocation7], 0
    %14 = vsyncpa [#allocation10], 0
    %15 = vsyncpa [#allocation5], 0
    // Predicated region
    $region2: #{tpu_custom_call.1} parent=1 // pred_check
      _
    $region3: #{tpu_custom_call.1} parent=1 // pred_check_branch
      %17 = sbr.rel (0) target = $region5
    $region4: #{tpu_custom_call.1} parent=1 // pred_region
      %s19 = ssub.s32 1024, 1024
      %20 = vsyncadd [#allocation4], %s19
      %s22 = sshll.u32 [#allocation3], 4
      %s23 = int_to_ptr.vmem [resolvable:$true] %s22
      %25 = dma.hbm_to_vmem [thread:$0]  %s0, 1024, %s23, [#allocation4]
    $region5: #{tpu_custom_call.1} parent=1 // pred_fallthru
      _
    // Predicated region
    $region6: #{tpu_custom_call.1} parent=1 // pred_check
      _
    $region7: #{tpu_custom_call.1} parent=1 // pred_check_branch
      %27 = sbr.rel (0) target = $region9
    $region8: #{tpu_custom_call.1} parent=1 // pred_region
      %s29 = ssub.s32 1024, 1024
      %30 = vsyncadd [#allocation7], %s29
      %s32 = sshll.u32 [#allocation6], 4
      %s33 = int_to_ptr.vmem [resolvable:$true] %s32
      %35 = dma.hbm_to_vmem [thread:$0]  %s1, 1024, %s33, [#allocation7]
    $region9: #{tpu_custom_call.1} parent=1 // pred_fallthru
      _
    // Predicated region
    $region10: #{tpu_custom_call.1} parent=1 // pred_check
      _
    $region11: #{tpu_custom_call.1} parent=1 // pred_check_branch
      %37 = sbr.rel (0) target = $region13
    $region12: #{tpu_custom_call.1} parent=1 // pred_region
      %s39 = ssub.s32 16, 16
      %40 = vsyncadd [#allocation7], %s39
      %s42 = sshll.u32 [#allocation8], 4
      %s43 = int_to_ptr.vmem [resolvable:$true] %s42
      %45 = dma.hbm_to_vmem [thread:$0]  %s2, 16, %s43, [#allocation7]
    $region13: #{tpu_custom_call.1} parent=1 // pred_fallthru
      _
    // Predicated region
    $region14: #{tpu_custom_call.1} parent=1 // pred_check
      _
    $region15: #{tpu_custom_call.1} parent=1 // pred_check_branch
      %47 = sbr.rel (0) target = $region17
    $region16: #{tpu_custom_call.1} parent=1 // pred_region
      %s49 = ssub.s32 128, 128
      %50 = vsyncadd [#allocation10], %s49
      %s52 = sshll.u32 [#allocation9], 4
      %s53 = int_to_ptr.vmem [resolvable:$true] %s52
      %55 = dma.hbm_to_vmem [thread:$0]  %s3, 128, %s53, [#allocation10]
    $region17: #{tpu_custom_call.1} parent=1 // pred_fallthru
      _
    // Predicated region
    $region18: #{tpu_custom_call.1} parent=1 // pred_check
      _
    $region19: #{tpu_custom_call.1} parent=1 // pred_check_branch
      %57 = sbr.rel (0) target = $region21
    $region20: #{tpu_custom_call.1} parent=1 // pred_region
      %s59 = ssub.s32 16, 16
      %60 = vsyncadd [#allocation10], %s59
      %s62 = sshll.u32 [#allocation11], 4
      %s63 = int_to_ptr.vmem [resolvable:$true] %s62
      %65 = dma.hbm_to_vmem [thread:$0]  %s4, 16, %s63, [#allocation10]
    $region21: #{tpu_custom_call.1} parent=1 // pred_fallthru
      _
    // Predicated region
    $region22: #{tpu_custom_call.1} parent=1 // pred_check
      _
    $region23: #{tpu_custom_call.1} parent=1 // pred_check_branch
      %67 = sbr.rel (0) target = $region25
    $region24: #{tpu_custom_call.1} parent=1 // pred_region
      _
    $region25: #{tpu_custom_call.1} parent=1 // pred_fallthru
      _
    // Predicated region
    $region26: #{tpu_custom_call.1} parent=1 // pred_check
      _
    $region27: #{tpu_custom_call.1} parent=1 // pred_check_branch
      %69 = sbr.rel (0) target = $region29
    $region28: #{tpu_custom_call.1} parent=1 // pred_region
      _
    $region29: #{tpu_custom_call.1} parent=1 // pred_fallthru
      _
    // Predicated region
    $region30: #{tpu_custom_call.1} parent=1 // pred_check
      _
    $region31: #{tpu_custom_call.1} parent=1 // pred_check_branch
      %71 = sbr.rel (0) target = $region33
    $region32: #{tpu_custom_call.1} parent=1 // pred_region
      %72 = dma.done [#allocation4], 1024
    $region33: #{tpu_custom_call.1} parent=1 // pred_fallthru
      _
    // Predicated region
    $region34: #{tpu_custom_call.1} parent=1 // pred_check
      _
    $region35: #{tpu_custom_call.1} parent=1 // pred_check_branch
      %74 = sbr.rel (0) target = $region37
    $region36: #{tpu_custom_call.1} parent=1 // pred_region
      %75 = dma.done [#allocation7], 1024
    $region37: #{tpu_custom_call.1} parent=1 // pred_fallthru
      _
    // Predicated region
    $region38: #{tpu_custom_call.1} parent=1 // pred_check
      _
    $region39: #{tpu_custom_call.1} parent=1 // pred_check_branch
      %77 = sbr.rel (0) target = $region41
    $region40: #{tpu_custom_call.1} parent=1 // pred_region
      %78 = dma.done [#allocation7], 16
    $region41: #{tpu_custom_call.1} parent=1 // pred_fallthru
      _
    // Predicated region
    $region42: #{tpu_custom_call.1} parent=1 // pred_check
      _
    $region43: #{tpu_custom_call.1} parent=1 // pred_check_branch
      %80 = sbr.rel (0) target = $region45
    $region44: #{tpu_custom_call.1} parent=1 // pred_region
      %81 = dma.done [#allocation10], 128
    $region45: #{tpu_custom_call.1} parent=1 // pred_fallthru
      _
    // Predicated region
    $region46: #{tpu_custom_call.1} parent=1 // pred_check
      _
    $region47: #{tpu_custom_call.1} parent=1 // pred_check_branch
      %83 = sbr.rel (0) target = $region49
    $region48: #{tpu_custom_call.1} parent=1 // pred_region
      %84 = dma.done [#allocation10], 16
    $region49: #{tpu_custom_call.1} parent=1 // pred_fallthru
      _
    %p85 = scmp.eq.s32.totalorder 0, 0
    // Predicated region
    $region50: #{tpu_custom_call.1} parent=1 // pred_check
      %p86 = pneg %p85
    $region51: #{tpu_custom_call.1} parent=1 // pred_check_branch
      %88 = sbr.rel (%p86) target = $region53
    $region52: #{tpu_custom_call.1} parent=1 // pred_region
      %v89 = vld [vmem:[#allocation3] sm:$0xff]
      %v90 = vld [vmem:[#allocation3 + $0x8] sm:$0xff]
      %v91 = vld [vmem:[#allocation3 + $0x10] sm:$0xff]
      %v92 = vld [vmem:[#allocation3 + $0x18] sm:$0xff]
      %v93 = vld [vmem:[#allocation3 + $0x20] sm:$0xff]
      %v94 = vld [vmem:[#allocation3 + $0x28] sm:$0xff]
      %v95 = vld [vmem:[#allocation3 + $0x30] sm:$0xff]
      %v96 = vld [vmem:[#allocation3 + $0x38] sm:$0xff]
      %v97 = vld [vmem:[#allocation6] sm:$0xff]
      %v98 = vld [vmem:[#allocation6 + $0x8] sm:$0xff]
      %v99 = vld [vmem:[#allocation6 + $0x10] sm:$0xff]
      %v100 = vld [vmem:[#allocation6 + $0x18] sm:$0xff]
      %v101 = vld [vmem:[#allocation6 + $0x20] sm:$0xff]
      %v102 = vld [vmem:[#allocation6 + $0x28] sm:$0xff]
      %v103 = vld [vmem:[#allocation6 + $0x30] sm:$0xff]
      %v104 = vld [vmem:[#allocation6 + $0x38] sm:$0xff]
      %v105 = vld [vmem:[#allocation8] sm:$0x1]
      %v107 = vlaneseq
      %v108 = vshrl.u32 %v107, 7
      %v109 = vsub.s32 0, %v108
      %v110 = vrot.slane %v105, %v109
      %112 = vmatprep.subr.mxu0 %v98
      %113 = vmatpush1.xpose.msra.mxu0 %v97
      %114 = vmatprep.subr.mxu0 0.0
      %115 = vmatpush1.xpose.msra.mxu0 0.0
      %116 = vmatprep.subr.mxu0 0.0
      %117 = vmatpush1.xpose.msra.mxu0 0.0
      %118 = vmatprep.subr.mxu0 0.0
      %119 = vmatpush1.xpose.msra.mxu0 0.0
      %120 = vmatprep.subr.mxu0 0.0
      %121 = vmatpush1.xpose.msra.mxu0 0.0
      %122 = vmatprep.subr.mxu0 0.0
      %123 = vmatpush1.xpose.msra.mxu0 0.0
      %124 = vmatprep.subr.mxu0 0.0
      %125 = vmatpush1.xpose.msra.mxu0 0.0
      %126 = vmatprep.subr.mxu0 0.0
      %127 = vmatpush1.xpose.msra.mxu0 0.0
      %128 = vmatprep.subr.mxu0 0.0
      %129 = vmatpush1.xpose.msra.mxu0 0.0
      %130 = vmatprep.subr.mxu0 0.0
      %131 = vmatpush1.xpose.msra.mxu0 0.0
      %132 = vmatprep.subr.mxu0 0.0
      %133 = vmatpush1.xpose.msra.mxu0 0.0
      %134 = vmatprep.subr.mxu0 0.0
      %135 = vmatpush1.xpose.msra.mxu0 0.0
      %136 = vmatprep.subr.mxu0 0.0
      %137 = vmatpush1.xpose.msra.mxu0 0.0
      %138 = vmatprep.subr.mxu0 0.0
      %139 = vmatpush1.xpose.msra.mxu0 0.0
      %140 = vmatprep.subr.mxu0 0.0
      %141 = vmatpush1.xpose.msra.mxu0 0.0
      %142 = vmatprep.subr.mxu0 0.0
      %143 = vmatpush1.xpose.msra.mxu0 0.0
      %144 = vmatprep.subr.mxu0 0.0
      %145 = vmatpush1.xpose.msra.mxu0 0.0
      %146 = vmatprep.subr.mxu0 0.0
      %147 = vmatpush1.xpose.msra.mxu0 0.0
      %148 = vmatprep.subr.mxu0 0.0
      %149 = vmatpush1.xpose.msra.mxu0 0.0
      %150 = vmatprep.subr.mxu0 0.0
      %151 = vmatpush1.xpose.msra.mxu0 0.0
      %152 = vmatprep.subr.mxu0 0.0
      %153 = vmatpush1.xpose.msra.mxu0 0.0
      %154 = vmatprep.subr.mxu0 0.0
      %155 = vmatpush1.xpose.msra.mxu0 0.0
      %156 = vmatprep.subr.mxu0 0.0
      %157 = vmatpush1.xpose.msra.mxu0 0.0
      %158 = vmatprep.subr.mxu0 0.0
      %159 = vmatpush1.xpose.msra.mxu0 0.0
      %160 = vmatprep.subr.mxu0 0.0
      %161 = vmatpush1.xpose.msra.mxu0 0.0
      %162 = vmatprep.subr.mxu0 0.0
      %163 = vmatpush1.xpose.msra.mxu0 0.0
      %164 = vmatprep.subr.mxu0 0.0
      %165 = vmatpush1.xpose.msra.mxu0 0.0
      %166 = vmatprep.subr.mxu0 0.0
      %167 = vmatpush1.xpose.msra.mxu0 0.0
      %168 = vmatprep.subr.mxu0 0.0
      %169 = vmatpush1.xpose.msra.mxu0 0.0
      %170 = vmatprep.subr.mxu0 0.0
      %171 = vmatpush1.xpose.msra.mxu0 0.0
      %172 = vmatprep.subr.mxu0 0.0
      %173 = vmatpush1.xpose.msra.mxu0 0.0
      %174 = vmatprep.subr.mxu0 0.0
      %175 = vmatpush1.xpose.msra.mxu0 0.0
      %176 = vmatprep.mubr.f32.mxu0 %v90
      %177 = vmatmul.mubr.f32.gmra.mrb[0].mxu0 %v89
      %v178 = vpop.f32.mrb[0].mxu0
      %v179 = vadd.f32 %v110, %v178
      %v180 = vpop.f32.mrb[0].mxu0
      %181 = vdwg.mxu0
      %182 = vmatprep.subr.mxu0 %v100
      %183 = vmatpush1.xpose.msra.mxu0 %v99
      %184 = vmatprep.subr.mxu0 0.0
      %185 = vmatpush1.xpose.msra.mxu0 0.0
      %186 = vmatprep.subr.mxu0 0.0
      %187 = vmatpush1.xpose.msra.mxu0 0.0
      %188 = vmatprep.subr.mxu0 0.0
      %189 = vmatpush1.xpose.msra.mxu0 0.0
      %190 = vmatprep.subr.mxu0 0.0
      %191 = vmatpush1.xpose.msra.mxu0 0.0
      %192 = vmatprep.subr.mxu0 0.0
      %193 = vmatpush1.xpose.msra.mxu0 0.0
      %194 = vmatprep.subr.mxu0 0.0
      %195 = vmatpush1.xpose.msra.mxu0 0.0
      %196 = vmatprep.subr.mxu0 0.0
      %197 = vmatpush1.xpose.msra.mxu0 0.0
      %198 = vmatprep.subr.mxu0 0.0
      %199 = vmatpush1.xpose.msra.mxu0 0.0
      %200 = vmatprep.subr.mxu0 0.0
      %201 = vmatpush1.xpose.msra.mxu0 0.0
      %202 = vmatprep.subr.mxu0 0.0
      %203 = vmatpush1.xpose.msra.mxu0 0.0
      %204 = vmatprep.subr.mxu0 0.0
      %205 = vmatpush1.xpose.msra.mxu0 0.0
      %206 = vmatprep.subr.mxu0 0.0
      %207 = vmatpush1.xpose.msra.mxu0 0.0
      %208 = vmatprep.subr.mxu0 0.0
      %209 = vmatpush1.xpose.msra.mxu0 0.0
      %210 = vmatprep.subr.mxu0 0.0
      %211 = vmatpush1.xpose.msra.mxu0 0.0
      %212 = vmatprep.subr.mxu0 0.0
      %213 = vmatpush1.xpose.msra.mxu0 0.0
      %214 = vmatprep.subr.mxu0 0.0
      %215 = vmatpush1.xpose.msra.mxu0 0.0
      %216 = vmatprep.subr.mxu0 0.0
      %217 = vmatpush1.xpose.msra.mxu0 0.0
      %218 = vmatprep.subr.mxu0 0.0
      %219 = vmatpush1.xpose.msra.mxu0 0.0
      %220 = vmatprep.subr.mxu0 0.0
      %221 = vmatpush1.xpose.msra.mxu0 0.0
      %222 = vmatprep.subr.mxu0 0.0
      %223 = vmatpush1.xpose.msra.mxu0 0.0
      %224 = vmatprep.subr.mxu0 0.0
      %225 = vmatpush1.xpose.msra.mxu0 0.0
      %226 = vmatprep.subr.mxu0 0.0
      %227 = vmatpush1.xpose.msra.mxu0 0.0
      %228 = vmatprep.subr.mxu0 0.0
      %229 = vmatpush1.xpose.msra.mxu0 0.0
      %230 = vmatprep.subr.mxu0 0.0
      %231 = vmatpush1.xpose.msra.mxu0 0.0
      %232 = vmatprep.subr.mxu0 0.0
      %233 = vmatpush1.xpose.msra.mxu0 0.0
      %234 = vmatprep.subr.mxu0 0.0
      %235 = vmatpush1.xpose.msra.mxu0 0.0
      %236 = vmatprep.subr.mxu0 0.0
      %237 = vmatpush1.xpose.msra.mxu0 0.0
      %238 = vmatprep.subr.mxu0 0.0
      %239 = vmatpush1.xpose.msra.mxu0 0.0
      %240 = vmatprep.subr.mxu0 0.0
      %241 = vmatpush1.xpose.msra.mxu0 0.0
      %242 = vmatprep.subr.mxu0 0.0
      %243 = vmatpush1.xpose.msra.mxu0 0.0
      %244 = vmatprep.subr.mxu0 0.0
      %245 = vmatpush1.xpose.msra.mxu0 0.0
      %246 = vmatprep.mubr.f32.mxu0 %v92
      %247 = vmatmul.mubr.f32.gmra.mrb[0].mxu0 %v91
      %v248 = vpop.f32.mrb[0].mxu0
      %v249 = vadd.f32 %v179, %v248
      %v250 = vpop.f32.mrb[0].mxu0
      %251 = vdwg.mxu0
      %252 = vmatprep.subr.mxu0 %v102
      %253 = vmatpush1.xpose.msra.mxu0 %v101
      %254 = vmatprep.subr.mxu0 0.0
      %255 = vmatpush1.xpose.msra.mxu0 0.0
      %256 = vmatprep.subr.mxu0 0.0
      %257 = vmatpush1.xpose.msra.mxu0 0.0
      %258 = vmatprep.subr.mxu0 0.0
      %259 = vmatpush1.xpose.msra.mxu0 0.0
      %260 = vmatprep.subr.mxu0 0.0
      %261 = vmatpush1.xpose.msra.mxu0 0.0
      %262 = vmatprep.subr.mxu0 0.0
      %263 = vmatpush1.xpose.msra.mxu0 0.0
      %264 = vmatprep.subr.mxu0 0.0
      %265 = vmatpush1.xpose.msra.mxu0 0.0
      %266 = vmatprep.subr.mxu0 0.0
      %267 = vmatpush1.xpose.msra.mxu0 0.0
      %268 = vmatprep.subr.mxu0 0.0
      %269 = vmatpush1.xpose.msra.mxu0 0.0
      %270 = vmatprep.subr.mxu0 0.0
      %271 = vmatpush1.xpose.msra.mxu0 0.0
      %272 = vmatprep.subr.mxu0 0.0
      %273 = vmatpush1.xpose.msra.mxu0 0.0
      %274 = vmatprep.subr.mxu0 0.0
      %275 = vmatpush1.xpose.msra.mxu0 0.0
      %276 = vmatprep.subr.mxu0 0.0
      %277 = vmatpush1.xpose.msra.mxu0 0.0
      %278 = vmatprep.subr.mxu0 0.0
      %279 = vmatpush1.xpose.msra.mxu0 0.0
      %280 = vmatprep.subr.mxu0 0.0
      %281 = vmatpush1.xpose.msra.mxu0 0.0
      %282 = vmatprep.subr.mxu0 0.0
      %283 = vmatpush1.xpose.msra.mxu0 0.0
      %284 = vmatprep.subr.mxu0 0.0
      %285 = vmatpush1.xpose.msra.mxu0 0.0
      %286 = vmatprep.subr.mxu0 0.0
      %287 = vmatpush1.xpose.msra.mxu0 0.0
      %288 = vmatprep.subr.mxu0 0.0
      %289 = vmatpush1.xpose.msra.mxu0 0.0
      %290 = vmatprep.subr.mxu0 0.0
      %291 = vmatpush1.xpose.msra.mxu0 0.0
      %292 = vmatprep.subr.mxu0 0.0
      %293 = vmatpush1.xpose.msra.mxu0 0.0
      %294 = vmatprep.subr.mxu0 0.0
      %295 = vmatpush1.xpose.msra.mxu0 0.0
      %296 = vmatprep.subr.mxu0 0.0
      %297 = vmatpush1.xpose.msra.mxu0 0.0
      %298 = vmatprep.subr.mxu0 0.0
      %299 = vmatpush1.xpose.msra.mxu0 0.0
      %300 = vmatprep.subr.mxu0 0.0
      %301 = vmatpush1.xpose.msra.mxu0 0.0
      %302 = vmatprep.subr.mxu0 0.0
      %303 = vmatpush1.xpose.msra.mxu0 0.0
      %304 = vmatprep.subr.mxu0 0.0
      %305 = vmatpush1.xpose.msra.mxu0 0.0
      %306 = vmatprep.subr.mxu0 0.0
      %307 = vmatpush1.xpose.msra.mxu0 0.0
      %308 = vmatprep.subr.mxu0 0.0
      %309 = vmatpush1.xpose.msra.mxu0 0.0
      %310 = vmatprep.subr.mxu0 0.0
      %311 = vmatpush1.xpose.msra.mxu0 0.0
      %312 = vmatprep.subr.mxu0 0.0
      %313 = vmatpush1.xpose.msra.mxu0 0.0
      %314 = vmatprep.subr.mxu0 0.0
      %315 = vmatpush1.xpose.msra.mxu0 0.0
      %316 = vmatprep.mubr.f32.mxu0 %v94
      %317 = vmatmul.mubr.f32.gmra.mrb[0].mxu0 %v93
      %v318 = vpop.f32.mrb[0].mxu0
      %v319 = vadd.f32 %v249, %v318
      %v320 = vpop.f32.mrb[0].mxu0
      %321 = vdwg.mxu0
      %322 = vmatprep.subr.mxu0 %v104
      %323 = vmatpush1.xpose.msra.mxu0 %v103
      %324 = vmatprep.subr.mxu0 0.0
      %325 = vmatpush1.xpose.msra.mxu0 0.0
      %326 = vmatprep.subr.mxu0 0.0
      %327 = vmatpush1.xpose.msra.mxu0 0.0
      %328 = vmatprep.subr.mxu0 0.0
      %329 = vmatpush1.xpose.msra.mxu0 0.0
      %330 = vmatprep.subr.mxu0 0.0
      %331 = vmatpush1.xpose.msra.mxu0 0.0
      %332 = vmatprep.subr.mxu0 0.0
      %333 = vmatpush1.xpose.msra.mxu0 0.0
      %334 = vmatprep.subr.mxu0 0.0
      %335 = vmatpush1.xpose.msra.mxu0 0.0
      %336 = vmatprep.subr.mxu0 0.0
      %337 = vmatpush1.xpose.msra.mxu0 0.0
      %338 = vmatprep.subr.mxu0 0.0
      %339 = vmatpush1.xpose.msra.mxu0 0.0
      %340 = vmatprep.subr.mxu0 0.0
      %341 = vmatpush1.xpose.msra.mxu0 0.0
      %342 = vmatprep.subr.mxu0 0.0
      %343 = vmatpush1.xpose.msra.mxu0 0.0
      %344 = vmatprep.subr.mxu0 0.0
      %345 = vmatpush1.xpose.msra.mxu0 0.0
      %346 = vmatprep.subr.mxu0 0.0
      %347 = vmatpush1.xpose.msra.mxu0 0.0
      %348 = vmatprep.subr.mxu0 0.0
      %349 = vmatpush1.xpose.msra.mxu0 0.0
      %350 = vmatprep.subr.mxu0 0.0
      %351 = vmatpush1.xpose.msra.mxu0 0.0
      %352 = vmatprep.subr.mxu0 0.0
      %353 = vmatpush1.xpose.msra.mxu0 0.0
      %354 = vmatprep.subr.mxu0 0.0
      %355 = vmatpush1.xpose.msra.mxu0 0.0
      %356 = vmatprep.subr.mxu0 0.0
      %357 = vmatpush1.xpose.msra.mxu0 0.0
      %358 = vmatprep.subr.mxu0 0.0
      %359 = vmatpush1.xpose.msra.mxu0 0.0
      %360 = vmatprep.subr.mxu0 0.0
      %361 = vmatpush1.xpose.msra.mxu0 0.0
      %362 = vmatprep.subr.mxu0 0.0
      %363 = vmatpush1.xpose.msra.mxu0 0.0
      %364 = vmatprep.subr.mxu0 0.0
      %365 = vmatpush1.xpose.msra.mxu0 0.0
      %366 = vmatprep.subr.mxu0 0.0
      %367 = vmatpush1.xpose.msra.mxu0 0.0
      %368 = vmatprep.subr.mxu0 0.0
      %369 = vmatpush1.xpose.msra.mxu0 0.0
      %370 = vmatprep.subr.mxu0 0.0
      %371 = vmatpush1.xpose.msra.mxu0 0.0
      %372 = vmatprep.subr.mxu0 0.0
      %373 = vmatpush1.xpose.msra.mxu0 0.0
      %374 = vmatprep.subr.mxu0 0.0
      %375 = vmatpush1.xpose.msra.mxu0 0.0
      %376 = vmatprep.subr.mxu0 0.0
      %377 = vmatpush1.xpose.msra.mxu0 0.0
      %378 = vmatprep.subr.mxu0 0.0
      %379 = vmatpush1.xpose.msra.mxu0 0.0
      %380 = vmatprep.subr.mxu0 0.0
      %381 = vmatpush1.xpose.msra.mxu0 0.0
      %382 = vmatprep.subr.mxu0 0.0
      %383 = vmatpush1.xpose.msra.mxu0 0.0
      %384 = vmatprep.subr.mxu0 0.0
      %385 = vmatpush1.xpose.msra.mxu0 0.0
      %386 = vmatprep.mubr.f32.mxu0 %v96
      %387 = vmatmul.mubr.f32.gmra.mrb[0].mxu0 %v95
      %v388 = vpop.f32.mrb[0].mxu0
      %v389 = vadd.f32 %v319, %v388
      %v390 = vpop.f32.mrb[0].mxu0
      %391 = vdwg.mxu0
      %v392 = vmax.f32 %v389, 0.0
      %v393 = vld [vmem:[#allocation9] sm:$0xff]
      %v394 = vld [vmem:[#allocation11] sm:$0x1]
      %v396 = vlaneseq
      %v397 = vshrl.u32 %v396, 7
      %v398 = vsub.s32 0, %v397
      %v399 = vrot.slane %v394, %v398
      %vm401 = vcmask 64512
      %v403 = vsel %vm401, %v392, 0
      %405 = vmatprep.subr.mxu0 0.0
      %406 = vmatpush1.msra.mxu0 %v393
      %407 = vmatprep.subr.mxu0 0.0
      %408 = vmatpush1.msra.mxu0 0.0
      %409 = vmatprep.subr.mxu0 0.0
      %410 = vmatpush1.msra.mxu0 0.0
      %411 = vmatprep.subr.mxu0 0.0
      %412 = vmatpush1.msra.mxu0 0.0
      %413 = vmatprep.subr.mxu0 0.0
      %414 = vmatpush1.msra.mxu0 0.0
      %415 = vmatprep.subr.mxu0 0.0
      %416 = vmatpush1.msra.mxu0 0.0
      %417 = vmatprep.subr.mxu0 0.0
      %418 = vmatpush1.msra.mxu0 0.0
      %419 = vmatprep.subr.mxu0 0.0
      %420 = vmatpush1.msra.mxu0 0.0
      %421 = vmatprep.subr.mxu0 0.0
      %422 = vmatpush1.msra.mxu0 0.0
      %423 = vmatprep.subr.mxu0 0.0
      %424 = vmatpush1.msra.mxu0 0.0
      %425 = vmatprep.subr.mxu0 0.0
      %426 = vmatpush1.msra.mxu0 0.0
      %427 = vmatprep.subr.mxu0 0.0
      %428 = vmatpush1.msra.mxu0 0.0
      %429 = vmatprep.subr.mxu0 0.0
      %430 = vmatpush1.msra.mxu0 0.0
      %431 = vmatprep.subr.mxu0 0.0
      %432 = vmatpush1.msra.mxu0 0.0
      %433 = vmatprep.subr.mxu0 0.0
      %434 = vmatpush1.msra.mxu0 0.0
      %435 = vmatprep.subr.mxu0 0.0
      %436 = vmatpush1.msra.mxu0 0.0
      %437 = vmatprep.subr.mxu0 0.0
      %438 = vmatpush1.msra.mxu0 0.0
      %439 = vmatprep.subr.mxu0 0.0
      %440 = vmatpush1.msra.mxu0 0.0
      %441 = vmatprep.subr.mxu0 0.0
      %442 = vmatpush1.msra.mxu0 0.0
      %443 = vmatprep.subr.mxu0 0.0
      %444 = vmatpush1.msra.mxu0 0.0
      %445 = vmatprep.subr.mxu0 0.0
      %446 = vmatpush1.msra.mxu0 0.0
      %447 = vmatprep.subr.mxu0 0.0
      %448 = vmatpush1.msra.mxu0 0.0
      %449 = vmatprep.subr.mxu0 0.0
      %450 = vmatpush1.msra.mxu0 0.0
      %451 = vmatprep.subr.mxu0 0.0
      %452 = vmatpush1.msra.mxu0 0.0
      %453 = vmatprep.subr.mxu0 0.0
      %454 = vmatpush1.msra.mxu0 0.0
      %455 = vmatprep.subr.mxu0 0.0
      %456 = vmatpush1.msra.mxu0 0.0
      %457 = vmatprep.subr.mxu0 0.0
      %458 = vmatpush1.msra.mxu0 0.0
      %459 = vmatprep.subr.mxu0 0.0
      %460 = vmatpush1.msra.mxu0 0.0
      %461 = vmatprep.subr.mxu0 0.0
      %462 = vmatpush1.msra.mxu0 0.0
      %463 = vmatprep.subr.mxu0 0.0
      %464 = vmatpush1.msra.mxu0 0.0
      %465 = vmatprep.subr.mxu0 0.0
      %466 = vmatpush1.msra.mxu0 0.0
      %467 = vmatprep.subr.mxu0 0.0
      %468 = vmatpush1.msra.mxu0 0.0
      %469 = vmatprep.mubr.f32.mxu0 0.0
      %470 = vmatmul.mubr.f32.gmra.mrb[0].mxu0 %v403
      %v471 = vpop.f32.mrb[0].mxu0
      %v472 = vadd.f32 %v399, %v471
      %v473 = vpop.f32.mrb[0].mxu0
      %474 = vdwg.mxu0
      %v475 = vmax.f32 %v472, 0.0
      %476 = vst.msk [vmem:[#allocation2] sm:$0xff] %vm401, %v475
    $region53: #{tpu_custom_call.1} parent=1 // pred_fallthru
      _
    %v477 = vld [vmem:[#allocation2] sm:$0xff]
    %v478 = vld [vmem:[%s5] sm:$0xff]
    %v479 = vld [vmem:[%s5 + $0x8] sm:$0xff]
    %v480 = vld [vmem:[%s6] sm:$0x3]
    %v482 = vlaneseq
    %v483 = vshrl.u32 %v482, 7
    %v484 = vsub.s32 0, %v483
    %v485 = vrot.slane %v480, %v484
    %v486 = vlaneseq
    %v487 = vshrl.u32 %v486, 7
    %v488 = vsub.s32 1, %v487
    %v489 = vrot.slane %v480, %v488
    %vm492 = vcmask 64512
    %v494 = vsel %vm492, %v477, 0
    %496 = vmatprep.subr.mxu0 %v479
    %497 = vmatpush1.msra.mxu0 %v478
    %498 = vmatprep.subr.mxu0 0.0
    %499 = vmatpush1.msra.mxu0 0.0
    %500 = vmatprep.subr.mxu0 0.0
    %501 = vmatpush1.msra.mxu0 0.0
    %502 = vmatprep.subr.mxu0 0.0
    %503 = vmatpush1.msra.mxu0 0.0
    %504 = vmatprep.subr.mxu0 0.0
    %505 = vmatpush1.msra.mxu0 0.0
    %506 = vmatprep.subr.mxu0 0.0
    %507 = vmatpush1.msra.mxu0 0.0
    %508 = vmatprep.subr.mxu0 0.0
    %509 = vmatpush1.msra.mxu0 0.0
    %510 = vmatprep.subr.mxu0 0.0
    %511 = vmatpush1.msra.mxu0 0.0
    %512 = vmatprep.subr.mxu0 0.0
    %513 = vmatpush1.msra.mxu0 0.0
    %514 = vmatprep.subr.mxu0 0.0
    %515 = vmatpush1.msra.mxu0 0.0
    %516 = vmatprep.subr.mxu0 0.0
    %517 = vmatpush1.msra.mxu0 0.0
    %518 = vmatprep.subr.mxu0 0.0
    %519 = vmatpush1.msra.mxu0 0.0
    %520 = vmatprep.subr.mxu0 0.0
    %521 = vmatpush1.msra.mxu0 0.0
    %522 = vmatprep.subr.mxu0 0.0
    %523 = vmatpush1.msra.mxu0 0.0
    %524 = vmatprep.subr.mxu0 0.0
    %525 = vmatpush1.msra.mxu0 0.0
    %526 = vmatprep.subr.mxu0 0.0
    %527 = vmatpush1.msra.mxu0 0.0
    %528 = vmatprep.subr.mxu0 0.0
    %529 = vmatpush1.msra.mxu0 0.0
    %530 = vmatprep.subr.mxu0 0.0
    %531 = vmatpush1.msra.mxu0 0.0
    %532 = vmatprep.subr.mxu0 0.0
    %533 = vmatpush1.msra.mxu0 0.0
    %534 = vmatprep.subr.mxu0 0.0
    %535 = vmatpush1.msra.mxu0 0.0
    %536 = vmatprep.subr.mxu0 0.0
    %537 = vmatpush1.msra.mxu0 0.0
    %538 = vmatprep.subr.mxu0 0.0
    %539 = vmatpush1.msra.mxu0 0.0
    %540 = vmatprep.subr.mxu0 0.0
    %541 = vmatpush1.msra.mxu0 0.0
    %542 = vmatprep.subr.mxu0 0.0
    %543 = vmatpush1.msra.mxu0 0.0
    %544 = vmatprep.subr.mxu0 0.0
    %545 = vmatpush1.msra.mxu0 0.0
    %546 = vmatprep.subr.mxu0 0.0
    %547 = vmatpush1.msra.mxu0 0.0
    %548 = vmatprep.subr.mxu0 0.0
    %549 = vmatpush1.msra.mxu0 0.0
    %550 = vmatprep.subr.mxu0 0.0
    %551 = vmatpush1.msra.mxu0 0.0
    %552 = vmatprep.subr.mxu0 0.0
    %553 = vmatpush1.msra.mxu0 0.0
    %554 = vmatprep.subr.mxu0 0.0
    %555 = vmatpush1.msra.mxu0 0.0
    %556 = vmatprep.subr.mxu0 0.0
    %557 = vmatpush1.msra.mxu0 0.0
    %558 = vmatprep.subr.mxu0 0.0
    %559 = vmatpush1.msra.mxu0 0.0
    %560 = vmatprep.mubr.f32.mxu0 0.0
    %561 = vmatmul.mubr.f32.gmra.mrb[0].mxu0 %v494
    %v562 = vpop.f32.mrb[0].mxu0
    %v563 = vadd.f32 %v485, %v562
    %v564 = vpop.f32.mrb[0].mxu0
    %v565 = vadd.f32 %v489, %v564
    %566 = vdwg.mxu0
    %v567 = vmax.f32 %v563, -2.5
    %v568 = vmax.f32 %v565, -2.5
    %v569 = vmin.f32 %v567, 2.5
    %v570 = vmin.f32 %v568, 2.5
    %571 = vst [vmem:[#allocation12] sm:$0xff] %v569
    %572 = vst [vmem:[#allocation12 + $0x8] sm:$0xff] %v570
    // Predicated region
    $region54: #{tpu_custom_call.1} parent=1 // pred_check
      _
    $region55: #{tpu_custom_call.1} parent=1 // pred_check_branch
      %574 = sbr.rel (0) target = $region57
    $region56: #{tpu_custom_call.1} parent=1 // pred_region
      %s576 = ssub.s32 256, 256
      %577 = vsyncadd [#allocation5], %s576
      %s579 = sshll.u32 [#allocation12], 4
      %s580 = int_to_ptr.vmem [resolvable:$true] %s579
      %582 = dma.vmem_to_hbm [thread:$0]  %s580, 256, %s7, [#allocation5]
    $region57: #{tpu_custom_call.1} parent=1 // pred_fallthru
      _
    // Predicated region
    $region58: #{tpu_custom_call.1} parent=1 // pred_check
      _
    $region59: #{tpu_custom_call.1} parent=1 // pred_check_branch
      %584 = sbr.rel (0) target = $region61
    $region60: #{tpu_custom_call.1} parent=1 // pred_region
      %585 = dma.done [#allocation5], 256
    $region61: #{tpu_custom_call.1} parent=1 // pred_fallthru
      _
    %586 = vsyncpa [#allocation4], 1
    %587 = vsyncpa [#allocation7], 1
    %588 = vsyncpa [#allocation10], 1
    %589 = vsyncpa [#allocation5], 1

</llo_original>
